<compile_context>
chip_gen: v5e
topology: v5e:2x2
jax: 0.10.0
libtpu: 0.0.40
codegen_flags: <defaults>
</compile_context>

<pallas_src>
import functools
import math

import numpy as np

import jax
import jax.numpy as jnp
from jax.experimental import pallas as pl
from jax.experimental.pallas import tpu as pltpu


def _action_kernel(w_ref, lane_m_ref, row_m_ref, x_ref, o_ref, *, channels, width):
    # w_ref      : (3, 3)        SMEM  conv weight (single in/out channel)
    # lane_m_ref : (2, L)        VMEM  row0: 0.0 where lane % V == 0 (chunk-left edge)
    #                                  row1: 0.0 where lane % V == V-1 (chunk-right edge)
    # row_m_ref  : (R, 2)        VMEM  col0: 0.0 where t == 0; col1: 0.0 where t == T-1
    # x_ref      : (R, L)        VMEM  R rows of the (nt, c*v) view, whole batch elems
    # o_ref      : (R, L)        VMEM
    C, V = channels, width
    R, L = x_ref.shape                       # L == C * V
    x = x_ref[...].astype(jnp.float32)

    # ---- channel mean, replicated into every V-wide lane chunk ----------------
    # Circular roll by multiples of V sums the C channel chunks at each spatial
    # offset; the result already carries the mean broadcast over channels.
    if C & (C - 1) == 0:                     # power of two: log2(C) roll+adds
        s = x
        sh = V
        while sh < L:
            s = s + pltpu.roll(s, shift=sh, axis=1)
            sh *= 2
    else:                                    # general C: C-1 roll+adds
        s = x
        for k in range(1, C):
            s = s + pltpu.roll(x, shift=(k * V) % L, axis=1)
    m = s * (1.0 / C)                        # (R, L)

    # ---- edge masks (precomputed on host, tiny) --------------------------------
    not_left = lane_m_ref[0:1, :]            # (1, L)
    not_right = lane_m_ref[1:2, :]           # (1, L)
    not_first = row_m_ref[:, 0:1]            # (R, 1)
    not_last = row_m_ref[:, 1:2]             # (R, 1)

    # ---- 3x3 conv (padding=1) on each (n_segment, V) mean plane, in-register ---
    # Horizontal (lane) neighbors, zeroed at chunk edges (also kills the
    # circular-wrap values the roll brings in).
    m_l = pltpu.roll(m, shift=1 % L, axis=1) * not_left        # m[., j-1]
    m_r = pltpu.roll(m, shift=(L - 1) % L, axis=1) * not_right  # m[., j+1]

    def row_comb(ki):
        return w_ref[ki, 0] * m_l + w_ref[ki, 1] * m + w_ref[ki, 2] * m_r

    rc_top, rc_mid, rc_bot = row_comb(0), row_comb(1), row_comb(2)

    # Vertical (sublane) neighbors; segment-boundary masks also kill both the
    # cross-batch rows and the block-boundary wrap rows (R % n_segment == 0).
    conv = (rc_mid
            + pltpu.roll(rc_top, shift=1 % R, axis=0) * not_first        # row t-1
            + pltpu.roll(rc_bot, shift=(R - 1) % R, axis=0) * not_last)  # row t+1

    gate = jax.nn.sigmoid(conv)              # EUP
    # x * sigmoid(conv) + x == x * (1 + gate), broadcast over channels for free
    # because gate is already replicated across the C lane chunks.
    o_ref[...] = (x * (1.0 + gate)).astype(o_ref.dtype)


def _choose_row_tile(nt, n_segment, row_bytes, target_bytes):
    """Largest row tile that divides nt, contains whole batch elements, is
    sublane-aligned (multiple of 8), fits the byte budget, and leaves a grid of
    >= 2 steps (v7x megacore).  Falls back to the whole array (always legal)."""
    step = n_segment * 8 // math.gcd(n_segment, 8)     # lcm(n_segment, 8)
    best = 0
    r = step
    while r < nt and r * row_bytes <= target_bytes:
        if nt % r == 0:
            best = r
        r += step
    return best if best else nt


def action_forward(x, w, *, n_segment=3, target_block_bytes=4 * 1024 * 1024):
    """ACTION-STE forward.  x: (nt, c, v) with nt = n_batch*n_segment; w: (3,3)."""
    nt, c, v = x.shape
    assert nt % n_segment == 0
    L = c * v
    x2 = x.reshape(nt, L)                    # free view: (c, v) is contiguous

    row_bytes = L * x.dtype.itemsize
    r_tile = _choose_row_tile(nt, n_segment, row_bytes, target_block_bytes)
    grid = (nt // r_tile,)

    # Edge masks (0.0 at zero-padded conv positions), built on host as f32.
    lane_idx = np.arange(L) % v
    lane_mask = np.stack([(lane_idx != 0), (lane_idx != v - 1)]).astype(np.float32)      # (2, L)
    seg_idx = np.arange(nt) % n_segment
    row_mask = np.stack([(seg_idx != 0), (seg_idx != n_segment - 1)], axis=1).astype(np.float32)  # (nt, 2)

    kernel = functools.partial(_action_kernel, channels=c, width=v)

    grid_spec = pltpu.PrefetchScalarGridSpec(
        num_scalar_prefetch=0,
        grid=grid,
        in_specs=[
            pl.BlockSpec(memory_space=pltpu.MemorySpace.SMEM),     # (3,3) conv weight
            pl.BlockSpec((2, L), lambda r: (0, 0)),                # lane edge masks
            pl.BlockSpec((r_tile, 2), lambda r: (r, 0)),           # row edge masks
            pl.BlockSpec((r_tile, L), lambda r: (r, 0)),           # x rows (lane-dense)
        ],
        out_specs=pl.BlockSpec((r_tile, L), lambda r: (r, 0)),
    )
    out2 = pl.pallas_call(
        kernel,
        out_shape=jax.ShapeDtypeStruct((nt, L), x.dtype),
        grid_spec=grid_spec,
        compiler_params=pltpu.CompilerParams(
            dimension_semantics=("parallel",),
            vmem_limit_bytes=32 * 1024 * 1024,
        ),
    )(w, jnp.asarray(lane_mask), jnp.asarray(row_mask), x2)
    return out2.reshape(nt, c, v)


def action_reference(x, w, *, n_segment=3):
    """Pure-JAX mirror of the PyTorch forward (for validation)."""
    nt, c, v = x.shape
    nb = nt // n_segment
    xp = x.reshape(nb, n_segment, c, v).transpose(0, 2, 1, 3)      # (nb, c, T, v)
    m = jnp.mean(xp, axis=1, keepdims=True)                        # (nb, 1, T, v)
    conv = jax.lax.conv_general_dilated(
        m, w.reshape(1, 1, 3, 3),
        window_strides=(1, 1), padding=((1, 1), (1, 1)),
        dimension_numbers=("NCHW", "OIHW", "NCHW"))
    s = jax.nn.sigmoid(conv.transpose(0, 2, 1, 3).reshape(nt, 1, v))
    return x * s + x


if __name__ == "__main__":
    n_segment = 3
    n_batch = 16              # nt = 48 -> row tile 24 -> 2-step parallel grid
    in_channels = 16          # shift_div=8 -> fold=2; reduced_channels unused in fwd
    v = 32
    nt = n_batch * n_segment

    key = jax.random.PRNGKey(0)
    kx, kw = jax.random.split(key)
    x = jax.random.normal(kx, (nt, in_channels, v), dtype=jnp.float32)
    # Deterministic init of action_p1_conv1 weight (Conv2d(1,1,3,3,bias=False)).
    w = 0.1 * jax.random.normal(kw, (3, 3), dtype=jnp.float32)

    out = action_forward(x, w, n_segment=n_segment)
    out = jax.block_until_ready(out)

    ref = action_reference(x, w, n_segment=n_segment)
    assert out.shape == (nt, in_channels, v)
    assert jnp.allclose(out, ref, atol=1e-5, rtol=1e-5), "mismatch vs reference"

    print("KERNEL_OK")
</pallas_src>

<mosaic_0001>
module attributes {stable_mosaic.version = 11 : i64} {
  func.func @_action_kernel(%arg0: i32, %arg1: memref<3x3xf32, #tpu.memory_space<smem>>, %arg2: memref<2x512xf32, #tpu.memory_space<vmem>>, %arg3: memref<24x2xf32, #tpu.memory_space<vmem>>, %arg4: memref<24x512xf32, #tpu.memory_space<vmem>>, %arg5: memref<24x512xf32, #tpu.memory_space<vmem>>) attributes {dimension_semantics = [#tpu.dimension_semantics<parallel>], iteration_bounds = array<i64: 2>, scalar_prefetch = 0 : i64, scratch_operands = 0 : i64, tpu.core_type = #tpu.core_type<tc>, window_params = [{transform_indices = @transform_0, window_bounds = array<i64: 3, 3>}, {pipeline_mode = #tpu.pipeline_mode<synchronous>, transform_indices = @transform_1, window_bounds = array<i64: 2, 512>}, {transform_indices = @transform_2, window_bounds = array<i64: 24, 2>}, {transform_indices = @transform_3, window_bounds = array<i64: 24, 512>}, {transform_indices = @transform_4, window_bounds = array<i64: 24, 512>}]} {
    %c0 = arith.constant 0 : index
    %c0_0 = arith.constant 0 : index
    %0 = vector.load %arg4[%c0, %c0_0] : memref<24x512xf32, #tpu.memory_space<vmem>>, vector<24x512xf32>
    %c32_i32 = arith.constant 32 : i32
    %1 = tpu.dynamic_rotate %0 by %c32_i32 dim 1 : vector<24x512xf32>, i32 -> vector<24x512xf32>
    %2 = arith.addf %0, %1 : vector<24x512xf32>
    %c64_i32 = arith.constant 64 : i32
    %3 = tpu.dynamic_rotate %2 by %c64_i32 dim 1 : vector<24x512xf32>, i32 -> vector<24x512xf32>
    %4 = arith.addf %2, %3 : vector<24x512xf32>
    %c128_i32 = arith.constant 128 : i32
    %5 = tpu.dynamic_rotate %4 by %c128_i32 dim 1 : vector<24x512xf32>, i32 -> vector<24x512xf32>
    %6 = arith.addf %4, %5 : vector<24x512xf32>
    %c256_i32 = arith.constant 256 : i32
    %7 = tpu.dynamic_rotate %6 by %c256_i32 dim 1 : vector<24x512xf32>, i32 -> vector<24x512xf32>
    %8 = arith.addf %6, %7 : vector<24x512xf32>
    %cst = arith.constant 6.250000e-02 : f32
    %9 = vector.broadcast %cst : f32 to vector<24x512xf32>
    %10 = arith.mulf %8, %9 : vector<24x512xf32>
    %c0_1 = arith.constant 0 : index
    %c0_2 = arith.constant 0 : index
    %11 = vector.load %arg2[%c0_1, %c0_2] : memref<2x512xf32, #tpu.memory_space<vmem>>, vector<1x512xf32>
    %c1 = arith.constant 1 : index
    %c0_3 = arith.constant 0 : index
    %12 = vector.load %arg2[%c1, %c0_3] : memref<2x512xf32, #tpu.memory_space<vmem>>, vector<1x512xf32>
    %c0_4 = arith.constant 0 : index
    %c0_5 = arith.constant 0 : index
    %13 = vector.load %arg3[%c0_4, %c0_5] : memref<24x2xf32, #tpu.memory_space<vmem>>, vector<24x1xf32>
    %c0_6 = arith.constant 0 : index
    %c1_7 = arith.constant 1 : index
    %14 = vector.load %arg3[%c0_6, %c1_7] : memref<24x2xf32, #tpu.memory_space<vmem>>, vector<24x1xf32>
    %c1_i32 = arith.constant 1 : i32
    %15 = tpu.dynamic_rotate %10 by %c1_i32 dim 1 : vector<24x512xf32>, i32 -> vector<24x512xf32>
    %16 = vector.broadcast %11 : vector<1x512xf32> to vector<24x512xf32>
    %17 = arith.mulf %15, %16 : vector<24x512xf32>
    %c511_i32 = arith.constant 511 : i32
    %18 = tpu.dynamic_rotate %10 by %c511_i32 dim 1 : vector<24x512xf32>, i32 -> vector<24x512xf32>
    %19 = vector.broadcast %12 : vector<1x512xf32> to vector<24x512xf32>
    %20 = arith.mulf %18, %19 : vector<24x512xf32>
    %c0_8 = arith.constant 0 : index
    %c0_9 = arith.constant 0 : index
    %21 = memref.load %arg1[%c0_8, %c0_9] : memref<3x3xf32, #tpu.memory_space<smem>>
    %22 = vector.broadcast %21 : f32 to vector<24x512xf32>
    %23 = arith.mulf %22, %17 : vector<24x512xf32>
    %c0_10 = arith.constant 0 : index
    %c1_11 = arith.constant 1 : index
    %24 = memref.load %arg1[%c0_10, %c1_11] : memref<3x3xf32, #tpu.memory_space<smem>>
    %25 = vector.broadcast %24 : f32 to vector<24x512xf32>
    %26 = arith.mulf %25, %10 : vector<24x512xf32>
    %27 = arith.addf %23, %26 : vector<24x512xf32>
    %c0_12 = arith.constant 0 : index
    %c2 = arith.constant 2 : index
    %28 = memref.load %arg1[%c0_12, %c2] : memref<3x3xf32, #tpu.memory_space<smem>>
    %29 = vector.broadcast %28 : f32 to vector<24x512xf32>
    %30 = arith.mulf %29, %20 : vector<24x512xf32>
    %31 = arith.addf %27, %30 : vector<24x512xf32>
    %c1_13 = arith.constant 1 : index
    %c0_14 = arith.constant 0 : index
    %32 = memref.load %arg1[%c1_13, %c0_14] : memref<3x3xf32, #tpu.memory_space<smem>>
    %33 = vector.broadcast %32 : f32 to vector<24x512xf32>
    %34 = arith.mulf %33, %17 : vector<24x512xf32>
    %c1_15 = arith.constant 1 : index
    %c1_16 = arith.constant 1 : index
    %35 = memref.load %arg1[%c1_15, %c1_16] : memref<3x3xf32, #tpu.memory_space<smem>>
    %36 = vector.broadcast %35 : f32 to vector<24x512xf32>
    %37 = arith.mulf %36, %10 : vector<24x512xf32>
    %38 = arith.addf %34, %37 : vector<24x512xf32>
    %c1_17 = arith.constant 1 : index
    %c2_18 = arith.constant 2 : index
    %39 = memref.load %arg1[%c1_17, %c2_18] : memref<3x3xf32, #tpu.memory_space<smem>>
    %40 = vector.broadcast %39 : f32 to vector<24x512xf32>
    %41 = arith.mulf %40, %20 : vector<24x512xf32>
    %42 = arith.addf %38, %41 : vector<24x512xf32>
    %c2_19 = arith.constant 2 : index
    %c0_20 = arith.constant 0 : index
    %43 = memref.load %arg1[%c2_19, %c0_20] : memref<3x3xf32, #tpu.memory_space<smem>>
    %44 = vector.broadcast %43 : f32 to vector<24x512xf32>
    %45 = arith.mulf %44, %17 : vector<24x512xf32>
    %c2_21 = arith.constant 2 : index
    %c1_22 = arith.constant 1 : index
    %46 = memref.load %arg1[%c2_21, %c1_22] : memref<3x3xf32, #tpu.memory_space<smem>>
    %47 = vector.broadcast %46 : f32 to vector<24x512xf32>
    %48 = arith.mulf %47, %10 : vector<24x512xf32>
    %49 = arith.addf %45, %48 : vector<24x512xf32>
    %c2_23 = arith.constant 2 : index
    %c2_24 = arith.constant 2 : index
    %50 = memref.load %arg1[%c2_23, %c2_24] : memref<3x3xf32, #tpu.memory_space<smem>>
    %51 = vector.broadcast %50 : f32 to vector<24x512xf32>
    %52 = arith.mulf %51, %20 : vector<24x512xf32>
    %53 = arith.addf %49, %52 : vector<24x512xf32>
    %c1_i32_25 = arith.constant 1 : i32
    %54 = tpu.dynamic_rotate %31 by %c1_i32_25 dim 0 : vector<24x512xf32>, i32 -> vector<24x512xf32>
    %55 = vector.broadcast %13 : vector<24x1xf32> to vector<24x512xf32>
    %56 = arith.mulf %54, %55 : vector<24x512xf32>
    %57 = arith.addf %42, %56 : vector<24x512xf32>
    %c23_i32 = arith.constant 23 : i32
    %58 = tpu.dynamic_rotate %53 by %c23_i32 dim 0 : vector<24x512xf32>, i32 -> vector<24x512xf32>
    %59 = vector.broadcast %14 : vector<24x1xf32> to vector<24x512xf32>
    %60 = arith.mulf %58, %59 : vector<24x512xf32>
    %61 = arith.addf %57, %60 : vector<24x512xf32>
    %62 = arith.negf %61 : vector<24x512xf32>
    %63 = math.exp %62 : vector<24x512xf32>
    %cst_26 = arith.constant 1.000000e+00 : f32
    %64 = vector.broadcast %cst_26 : f32 to vector<24x512xf32>
    %65 = arith.addf %64, %63 : vector<24x512xf32>
    %66 = arith.divf %64, %65 : vector<24x512xf32>
    %cst_27 = arith.constant 1.000000e+00 : f32
    %67 = vector.broadcast %cst_27 : f32 to vector<24x512xf32>
    %68 = arith.addf %67, %66 : vector<24x512xf32>
    %69 = arith.mulf %0, %68 : vector<24x512xf32>
    %c0_28 = arith.constant 0 : index
    %c0_29 = arith.constant 0 : index
    %70 = vector.load %arg5[%c0_28, %c0_29] : memref<24x512xf32, #tpu.memory_space<vmem>>, vector<24x512xf32>
    tpu.vector_store %arg5[%c0_28, %c0_29], %69 {strides = array<i32>} : memref<24x512xf32, #tpu.memory_space<vmem>>, vector<24x512xf32>,
    return
  }
  func.func @transform_0(%arg0: i32) -> (i32, i32) {
    %c0_i32 = arith.constant 0 : i32
    %c0_i32_0 = arith.constant 0 : i32
    %c0_i32_1 = arith.constant 0 : i32
    return %c0_i32, %c0_i32_0 : i32, i32
  }
  func.func @transform_1(%arg0: i32) -> (i32, i32) {
    %c0_i32 = arith.constant 0 : i32
    %c0_i32_0 = arith.constant 0 : i32
    %c0_i32_1 = arith.constant 0 : i32
    return %c0_i32, %c0_i32_0 : i32, i32
  }
  func.func @transform_2(%arg0: i32) -> (i32, i32) {
    %c0_i32 = arith.constant 0 : i32
    %c0_i32_0 = arith.constant 0 : i32
    return %arg0, %c0_i32 : i32, i32
  }
  func.func @transform_3(%arg0: i32) -> (i32, i32) {
    %c0_i32 = arith.constant 0 : i32
    %c0_i32_0 = arith.constant 0 : i32
    return %arg0, %c0_i32 : i32, i32
  }
  func.func @transform_4(%arg0: i32) -> (i32, i32) {
    %c0_i32 = arith.constant 0 : i32
    %c0_i32_0 = arith.constant 0 : i32
    return %arg0, %c0_i32 : i32, i32
  }
}

</mosaic_0001>

<llo_original>
// kernel: tpu_custom_call.1
$region0: #{tpu_custom_call.1}
  #allocation0 [shape = 'u32[]', space=smem, size = 0x4, offset = 0x4, fixed_abs, tag = 'smem constant byte address 0x4 - core index']
  #allocation1 [shape = 'u32[72,128]{1,0:T(1,128)}', space=vmem, size = 0x9000, scoped, tag = 'internal scratch']
  %s0 = inlined_call_operand.vmem [shape: f32[3,3], index: 0, kind: input, shape index: {}]
  %s1 = inlined_call_operand.vmem [shape: f32[2,512], index: 1, kind: input, shape index: {}]
  %s2 = inlined_call_operand.vmem [shape: f32[48,2], index: 2, kind: input, shape index: {}]
  %s3 = inlined_call_operand.hbm [shape: f32[48,512], index: 3, kind: input, shape index: {}]
  %s4 = inlined_call_operand.hbm [shape: f32[48,512], index: 4, kind: output, shape index: {}]
  %s5 = sld [smem:[#allocation0]]
  $region57: #{tpu_custom_call.1} parent=0
    _
  %s7 = ssub.s32 1, %s5
  %s8 = scalar_select 0, %s7, %s5
  $region1: #{tpu_custom_call.1} parent=0
    #allocation2 [shape = 'u8[2048]{0}', space=smem, size = 0x800, scoped, tag = 'input window, operand 0, single buffered']
    #allocation3 [shape = 's32[2]{0}', space=sflag, size = 0x8, scoped, tag = 'scoped memory for tpu_custom_call.1']
    #allocation4 [shape = 's32[2]{0}', space=sflag, size = 0x8, scoped, tag = 'scoped memory for tpu_custom_call.1']
    #allocation5 [shape = 's32[2]{0}', space=sflag, size = 0x8, scoped, tag = 'scoped memory for tpu_custom_call.1']
    #allocation6 [shape = 'u8[98304]{0}', space=vmem, size = 0x18000, scoped, tag = 'input window, operand 3']
    #allocation7 [shape = 'u8[98304]{0}', space=vmem, size = 0x18000, scoped, tag = 'output window, operand 0']
    %9 = vsyncpa [#allocation5], 0
    %10 = vsyncpa [#allocation3], 0
    %s11 = scalar_lea.sflag [#allocation3], 1
    %12 = vsyncpa %s11, 0
    %13 = vsyncpa [#allocation4], 0
    %s14 = scalar_lea.sflag [#allocation4], 1
    %15 = vsyncpa %s14, 0
    loop: start=0, step=1, limit=4
    $region2: #{tpu_custom_call.1} parent=1 // loop_pre_header
      _
    $region3: #{tpu_custom_call.1} parent=1 // loop_header
      %s17 = sphi 0, %s21
      %p18 = scmp.ge.s32.totalorder %s17, 4
      %s25 = sphi 0, %s25
      %s27 = sphi 0, %s25
      %s28 = sphi 0, %s27
      %s42 = sphi 0, %s28
      %s46 = sphi 0, %s46
      %s48 = sphi 0, %s46
      %s49 = sphi 0, %s48
      %s63 = sphi 0, %s49
      %s69 = sphi 0, %s71
      %s72 = sphi 0, %s69
      %s73 = sphi 0, %s72
      %s89 = sphi 0, %s73
      %s95 = sphi 0, %s97
      %s98 = sphi 0, %s95
      %s99 = sphi 0, %s98
      %s115 = sphi 0, %s99
      %s121 = sphi 0, %s123
      %s124 = sphi 0, %s121
      %s125 = sphi 0, %s124
      %s141 = sphi 0, %s125
    $region4: #{tpu_custom_call.1} parent=1 // loop_header_branch
      %20 = sbr.rel (%p18) target = $region8
    $region5: #{tpu_custom_call.1} parent=1 // loop_body
      %s22 = ssub.s32 %s17, 1
      %s23 = ssub.s32 %s17, 2
      %s24 = sadd.s32 %s17, 1
      %s26 = sadd.s32 %s25, 1
      %p29 = scmp.eq.s32.totalorder %s17, 1
      %p30 = scmp.ne.s32.totalorder %s25, %s27
      %p31 = scmp.eq.s32.totalorder %s17, 0
      %p32 = por %p30, %p31
      %p33 = scmp.ne.s32.totalorder %s25, %s27
      %p34 = scmp.eq.s32.totalorder %s22, 1
      %p35 = por %p33, %p34
      %p36 = scmp.ne.s32.totalorder %s27, %s28
      %p37 = scmp.eq.s32.totalorder %s22, 0
      %p38 = por %p36, %p37
      %p39 = scmp.ne.s32.totalorder %s27, %s28
      %p40 = scmp.eq.s32.totalorder %s23, 1
      %p41 = por %p39, %p40
      %p43 = scmp.ne.s32.totalorder %s28, %s42
      %p44 = scmp.eq.s32.totalorder %s23, 0
      %p45 = por %p43, %p44
      %s47 = sadd.s32 %s46, 1
      %p50 = scmp.eq.s32.totalorder %s17, 1
      %p51 = scmp.ne.s32.totalorder %s46, %s48
      %p52 = scmp.eq.s32.totalorder %s17, 0
      %p53 = por %p51, %p52
      %p54 = scmp.ne.s32.totalorder %s46, %s48
      %p55 = scmp.eq.s32.totalorder %s22, 1
      %p56 = por %p54, %p55
      %p57 = scmp.ne.s32.totalorder %s48, %s49
      %p58 = scmp.eq.s32.totalorder %s22, 0
      %p59 = por %p57, %p58
      %p60 = scmp.ne.s32.totalorder %s48, %s49
      %p61 = scmp.eq.s32.totalorder %s23, 1
      %p62 = por %p60, %p61
      %p64 = scmp.ne.s32.totalorder %s49, %s63
      %p65 = scmp.eq.s32.totalorder %s23, 0
      %p66 = por %p64, %p65
      %s67 = ssub.s32 %s17, %s24
      %p68 = scmp.eq.s32.totalorder %s67, 0
      %s70 = sadd.s32 %s69, 1
      %s71 = scalar_select %p68, %s69, %s70
      %p74 = pneg %p68
      %p75 = scmp.eq.s32.totalorder %s17, 1
      %p76 = por %p74, %p75
      %p77 = scmp.ne.s32.totalorder %s69, %s72
      %p78 = scmp.eq.s32.totalorder %s17, 0
      %p79 = por %p77, %p78
      %p80 = scmp.ne.s32.totalorder %s69, %s72
      %p81 = scmp.eq.s32.totalorder %s22, 1
      %p82 = por %p80, %p81
      %p83 = scmp.ne.s32.totalorder %s72, %s73
      %p84 = scmp.eq.s32.totalorder %s22, 0
      %p85 = por %p83, %p84
      %p86 = scmp.ne.s32.totalorder %s72, %s73
      %p87 = scmp.eq.s32.totalorder %s23, 1
      %p88 = por %p86, %p87
      %p90 = scmp.ne.s32.totalorder %s73, %s89
      %p91 = scmp.eq.s32.totalorder %s23, 0
      %p92 = por %p90, %p91
      %s93 = ssub.s32 %s17, %s24
      %p94 = scmp.eq.s32.totalorder %s93, 0
      %s96 = sadd.s32 %s95, 1
      %s97 = scalar_select %p94, %s95, %s96
      %p100 = pneg %p94
      %p101 = scmp.eq.s32.totalorder %s17, 1
      %p102 = por %p100, %p101
      %p103 = scmp.ne.s32.totalorder %s95, %s98
      %p104 = scmp.eq.s32.totalorder %s17, 0
      %p105 = por %p103, %p104
      %p106 = scmp.ne.s32.totalorder %s95, %s98
      %p107 = scmp.eq.s32.totalorder %s22, 1
      %p108 = por %p106, %p107
      %p109 = scmp.ne.s32.totalorder %s98, %s99
      %p110 = scmp.eq.s32.totalorder %s22, 0
      %p111 = por %p109, %p110
      %p112 = scmp.ne.s32.totalorder %s98, %s99
      %p113 = scmp.eq.s32.totalorder %s23, 1
      %p114 = por %p112, %p113
      %p116 = scmp.ne.s32.totalorder %s99, %s115
      %p117 = scmp.eq.s32.totalorder %s23, 0
      %p118 = por %p116, %p117
      %s119 = ssub.s32 %s17, %s24
      %p120 = scmp.eq.s32.totalorder %s119, 0
      %s122 = sadd.s32 %s121, 1
      %s123 = scalar_select %p120, %s121, %s122
      %p126 = pneg %p120
      %p127 = scmp.eq.s32.totalorder %s17, 1
      %p128 = por %p126, %p127
      %p129 = scmp.ne.s32.totalorder %s121, %s124
      %p130 = scmp.eq.s32.totalorder %s17, 0
      %p131 = por %p129, %p130
      %p132 = scmp.ne.s32.totalorder %s121, %s124
      %p133 = scmp.eq.s32.totalorder %s22, 1
      %p134 = por %p132, %p133
      %p135 = scmp.ne.s32.totalorder %s124, %s125
      %p136 = scmp.eq.s32.totalorder %s22, 0
      %p137 = por %p135, %p136
      %p138 = scmp.ne.s32.totalorder %s124, %s125
      %p139 = scmp.eq.s32.totalorder %s23, 1
      %p140 = por %p138, %p139
      %p142 = scmp.ne.s32.totalorder %s125, %s141
      %p143 = scmp.eq.s32.totalorder %s23, 0
      %p144 = por %p142, %p143
      %p145 = scmp.le.s32.totalorder 1, %s17
      %p146 = scmp.lt.s32.totalorder %s17, 3
      %p147 = pnand %p145, %p146
      %p148 = pneg %p147
      // Predicated region
      $region9: #{tpu_custom_call.1} parent=5 // pred_check
        _
      $region10: #{tpu_custom_call.1} parent=5 // pred_check_branch
        %150 = sbr.rel (%p147) target = $region12
      $region11: #{tpu_custom_call.1} parent=5 // pred_region
        %s151 = ssub.s32 %s17, 1
        // Predicated region
        $region13: #{tpu_custom_call.1} parent=11 // pred_check
          %p152 = pneg %p38
        $region14: #{tpu_custom_call.1} parent=11 // pred_check_branch
          %154 = sbr.rel (%p152) target = $region16
        $region15: #{tpu_custom_call.1} parent=11 // pred_region
          %156 = vsyncadd [#allocation5], 0
          %s158 = sshll.u32 %s0, 4
          %s159 = int_to_ptr.vmem [resolvable:$true] %s158
          %161 = dma.vmem_to_smem %s159, 64, [#allocation2], [#allocation5]
        $region16: #{tpu_custom_call.1} parent=11 // pred_fallthru
          _
        // Predicated region
        $region17: #{tpu_custom_call.1} parent=11 // pred_check
          %p162 = pneg %p59
        $region18: #{tpu_custom_call.1} parent=11 // pred_check_branch
          %164 = sbr.rel (%p162) target = $region20
        $region19: #{tpu_custom_call.1} parent=11 // pred_region
          _
        $region20: #{tpu_custom_call.1} parent=11 // pred_fallthru
          _
      $region12: #{tpu_custom_call.1} parent=5 // pred_fallthru
        _
      %p165 = scmp.lt.s32.totalorder %s17, 2
      // Predicated region
      $region21: #{tpu_custom_call.1} parent=5 // pred_check
        %p166 = pneg %p165
      $region22: #{tpu_custom_call.1} parent=5 // pred_check_branch
        %168 = sbr.rel (%p166) target = $region24
      $region23: #{tpu_custom_call.1} parent=5 // pred_region
        // Predicated region
        $region25: #{tpu_custom_call.1} parent=23 // pred_check
          %p169 = pneg %p79
        $region26: #{tpu_custom_call.1} parent=23 // pred_check_branch
          %171 = sbr.rel (%p169) target = $region28
        $region27: #{tpu_custom_call.1} parent=23 // pred_region
          %s172 = smul.u32 3, %s17
          %p173 = scmp.lt.s32.totalorder %s172, 5
          %s174 = scalar_select %p173, %s172, 5
          %s175 = smul.addr %s174, 8
          %s176 = scalar_lea.vmem %s2, %s175
          %s177 = smul.u32 3, %s17
        $region28: #{tpu_custom_call.1} parent=23 // pred_fallthru
          _
        // Predicated region
        $region29: #{tpu_custom_call.1} parent=23 // pred_check
          %p178 = pneg %p105
        $region30: #{tpu_custom_call.1} parent=23 // pred_check_branch
          %180 = sbr.rel (%p178) target = $region32
        $region31: #{tpu_custom_call.1} parent=23 // pred_region
          %s181 = sand.u32 %s95, 1
          %s182 = scalar_lea.sflag [#allocation3], %s181
          %s183 = sand.u32 %s95, 1
          %s184 = smul.addr %s183, 96
          %s185 = scalar_lea.vmem [#allocation6], %s184
          %s186 = smul.u32 3, %s17
          %188 = vsyncadd %s182, 0
          %s189 = smul.addr %s186, 4
          %s190 = smul.addr %s189, 8
          %s191 = scalar_lea.hbm %s3, %s190
          %s192 = sshll.u32 %s191, 4
          %s193 = int_to_ptr.hbm [resolvable:$true] %s192
          %s194 = sshll.u32 %s185, 4
          %s195 = int_to_ptr.vmem [resolvable:$true] %s194
          %200 = dma.hbm_to_vmem [thread:$0]  %s193, 1536, %s195, %s182, 512, 512, 32
        $region32: #{tpu_custom_call.1} parent=23 // pred_fallthru
          _
      $region24: #{tpu_custom_call.1} parent=5 // pred_fallthru
        _
      %p201 = scmp.le.s32.totalorder 1, %s17
      %p202 = scmp.lt.s32.totalorder %s17, 3
      %p203 = pnand %p201, %p202
      %p204 = pneg %p203
      // Predicated region
      $region33: #{tpu_custom_call.1} parent=5 // pred_check
        _
      $region34: #{tpu_custom_call.1} parent=5 // pred_check_branch
        %206 = sbr.rel (%p203) target = $region36
      $region35: #{tpu_custom_call.1} parent=5 // pred_region
        %s207 = ssub.s32 %s17, 1
        // Predicated region
        $region37: #{tpu_custom_call.1} parent=35 // pred_check
          %p208 = pneg %p38
        $region38: #{tpu_custom_call.1} parent=35 // pred_check_branch
          %210 = sbr.rel (%p208) target = $region40
        $region39: #{tpu_custom_call.1} parent=35 // pred_region
          %212 = dma.done [#allocation5], 64
        $region40: #{tpu_custom_call.1} parent=35 // pred_fallthru
          _
        %s213 = sand.u32 %s98, 1
        %s214 = scalar_lea.sflag [#allocation3], %s213
        %s215 = sand.u32 %s98, 1
        %s216 = smul.addr %s215, 96
        %s217 = scalar_lea.vmem [#allocation6], %s216
        // Predicated region
        $region41: #{tpu_custom_call.1} parent=35 // pred_check
          %p218 = pneg %p111
        $region42: #{tpu_custom_call.1} parent=35 // pred_check_branch
          %220 = sbr.rel (%p218) target = $region44
        $region43: #{tpu_custom_call.1} parent=35 // pred_region
          %222 = dma.done %s214, 1536
        $region44: #{tpu_custom_call.1} parent=35 // pred_fallthru
          _
        %223 = sfence
        %p224 = pneg %p38
        %p225 = pneg %p35
        %p226 = pneg %p59
        %p227 = pneg %p56
        %s228 = smul.u32 3, %s22
        %p229 = scmp.lt.s32.totalorder %s228, 5
        %s230 = scalar_select %p229, %s228, 5
        %s231 = smul.addr %s230, 8
        %s232 = scalar_lea.vmem %s2, %s231
        %p233 = pneg %p85
        %p234 = pneg %p82
        %s235 = sand.u32 %s98, 1
        %s236 = scalar_lea.sflag [#allocation3], %s235
        %s237 = sand.u32 %s98, 1
        %s238 = smul.addr %s237, 96
        %s239 = scalar_lea.vmem [#allocation6], %s238
        %p240 = pneg %p111
        %p241 = pneg %p108
        %p242 = pneg %p137
        %p243 = pneg %p134
        %s244 = sand.u32 %s124, 1
        %s245 = scalar_lea.sflag [#allocation4], %s244
        %s246 = sand.u32 %s124, 1
        %s247 = smul.addr %s246, 96
        %s248 = scalar_lea.vmem [#allocation7], %s247
        %s249 = smul.u32 3, %s22
        %p250 = scmp.lt.s32.totalorder %s249, 5
        %s251 = scalar_select %p250, %s249, 5
        %s252 = smul.addr %s251, 8
        %s253 = scalar_lea.vmem %s2, %s252
        %s254 = smul.u32 3, %s22
        %s255 = smul.u32 3, %s22
        %s256 = smul.u32 3, %s22
        %v257 = vld [vmem:[%s217] sm:$0xff]
        %v258 = vld [vmem:[%s217 + $0x8] sm:$0xff]
        %v259 = vld [vmem:[%s217 + $0x10] sm:$0xff]
        %v260 = vld [vmem:[%s217 + $0x18] sm:$0xff]
        %v261 = vld [vmem:[%s217 + $0x20] sm:$0xff]
        %v262 = vld [vmem:[%s217 + $0x28] sm:$0xff]
        %v263 = vld [vmem:[%s217 + $0x30] sm:$0xff]
        %v264 = vld [vmem:[%s217 + $0x38] sm:$0xff]
        %v265 = vld [vmem:[%s217 + $0x40] sm:$0xff]
        %v266 = vld [vmem:[%s217 + $0x48] sm:$0xff]
        %v267 = vld [vmem:[%s217 + $0x50] sm:$0xff]
        %v268 = vld [vmem:[%s217 + $0x58] sm:$0xff]
        %269 = vrot.lane.b32.xlu0 %v257, 32
        %v270 = vpop.permute.xlu0 %269
        %271 = vrot.lane.b32.xlu0 %v261, 32
        %v272 = vpop.permute.xlu0 %271
        %273 = vrot.lane.b32.xlu0 %v265, 32
        %v274 = vpop.permute.xlu0 %273
        %275 = vrot.lane.b32.xlu0 %v258, 32
        %v276 = vpop.permute.xlu0 %275
        %277 = vrot.lane.b32.xlu0 %v262, 32
        %v278 = vpop.permute.xlu0 %277
        %279 = vrot.lane.b32.xlu0 %v266, 32
        %v280 = vpop.permute.xlu0 %279
        %281 = vrot.lane.b32.xlu0 %v259, 32
        %v282 = vpop.permute.xlu0 %281
        %283 = vrot.lane.b32.xlu0 %v263, 32
        %v284 = vpop.permute.xlu0 %283
        %285 = vrot.lane.b32.xlu0 %v267, 32
        %v286 = vpop.permute.xlu0 %285
        %287 = vrot.lane.b32.xlu0 %v260, 32
        %v288 = vpop.permute.xlu0 %287
        %289 = vrot.lane.b32.xlu0 %v264, 32
        %v290 = vpop.permute.xlu0 %289
        %291 = vrot.lane.b32.xlu0 %v268, 32
        %v292 = vpop.permute.xlu0 %291
        %v293 = vlaneseq
        %v294 = vand.u32 %v293, 127
        %vm295 = vcmp.lt.s32.totalorder %v294, 32
        %v296 = vsel %vm295, %v282, %v288
        %v297 = vsel %vm295, %v284, %v290
        %v298 = vsel %vm295, %v286, %v292
        %v299 = vsel %vm295, %v276, %v282
        %v300 = vsel %vm295, %v278, %v284
        %v301 = vsel %vm295, %v280, %v286
        %v302 = vsel %vm295, %v270, %v276
        %v303 = vsel %vm295, %v272, %v278
        %v304 = vsel %vm295, %v274, %v280
        %v305 = vsel %vm295, %v288, %v270
        %v306 = vsel %vm295, %v290, %v272
        %v307 = vsel %vm295, %v292, %v274
        %v308 = vadd.f32 %v257, %v305
        %v309 = vadd.f32 %v258, %v302
        %v310 = vadd.f32 %v259, %v299
        %v311 = vadd.f32 %v260, %v296
        %v312 = vadd.f32 %v261, %v306
        %v313 = vadd.f32 %v262, %v303
        %v314 = vadd.f32 %v263, %v300
        %v315 = vadd.f32 %v264, %v297
        %v316 = vadd.f32 %v265, %v307
        %v317 = vadd.f32 %v266, %v304
        %v318 = vadd.f32 %v267, %v301
        %v319 = vadd.f32 %v268, %v298
        %320 = vrot.lane.b32.xlu0 %v308, 64
        %v321 = vpop.permute.xlu0 %320
        %322 = vrot.lane.b32.xlu0 %v312, 64
        %v323 = vpop.permute.xlu0 %322
        %324 = vrot.lane.b32.xlu0 %v316, 64
        %v325 = vpop.permute.xlu0 %324
        %326 = vrot.lane.b32.xlu0 %v309, 64
        %v327 = vpop.permute.xlu0 %326
        %328 = vrot.lane.b32.xlu0 %v313, 64
        %v329 = vpop.permute.xlu0 %328
        %330 = vrot.lane.b32.xlu0 %v317, 64
        %v331 = vpop.permute.xlu0 %330
        %332 = vrot.lane.b32.xlu0 %v310, 64
        %v333 = vpop.permute.xlu0 %332
        %334 = vrot.lane.b32.xlu0 %v314, 64
        %v335 = vpop.permute.xlu0 %334
        %336 = vrot.lane.b32.xlu0 %v318, 64
        %v337 = vpop.permute.xlu0 %336
        %338 = vrot.lane.b32.xlu0 %v311, 64
        %v339 = vpop.permute.xlu0 %338
        %340 = vrot.lane.b32.xlu0 %v315, 64
        %v341 = vpop.permute.xlu0 %340
        %342 = vrot.lane.b32.xlu0 %v319, 64
        %v343 = vpop.permute.xlu0 %342
        %vm344 = vcmp.lt.s32.totalorder %v294, 64
        %v345 = vsel %vm344, %v333, %v339
        %v346 = vsel %vm344, %v335, %v341
        %v347 = vsel %vm344, %v337, %v343
        %v348 = vsel %vm344, %v327, %v333
        %v349 = vsel %vm344, %v329, %v335
        %v350 = vsel %vm344, %v331, %v337
        %v351 = vsel %vm344, %v321, %v327
        %v352 = vsel %vm344, %v323, %v329
        %v353 = vsel %vm344, %v325, %v331
        %v354 = vsel %vm344, %v339, %v321
        %v355 = vsel %vm344, %v341, %v323
        %v356 = vsel %vm344, %v343, %v325
        %v357 = vadd.f32 %v308, %v354
        %v358 = vadd.f32 %v309, %v351
        %v359 = vadd.f32 %v310, %v348
        %v360 = vadd.f32 %v311, %v345
        %v361 = vadd.f32 %v312, %v355
        %v362 = vadd.f32 %v313, %v352
        %v363 = vadd.f32 %v314, %v349
        %v364 = vadd.f32 %v315, %v346
        %v365 = vadd.f32 %v316, %v356
        %v366 = vadd.f32 %v317, %v353
        %v367 = vadd.f32 %v318, %v350
        %v368 = vadd.f32 %v319, %v347
        %v369 = vadd.f32 %v357, %v360
        %v370 = vadd.f32 %v358, %v357
        %v371 = vadd.f32 %v359, %v358
        %v372 = vadd.f32 %v360, %v359
        %v373 = vadd.f32 %v361, %v364
        %v374 = vadd.f32 %v362, %v361
        %v375 = vadd.f32 %v363, %v362
        %v376 = vadd.f32 %v364, %v363
        %v377 = vadd.f32 %v365, %v368
        %v378 = vadd.f32 %v366, %v365
        %v379 = vadd.f32 %v367, %v366
        %v380 = vadd.f32 %v368, %v367
        %v381 = vadd.f32 %v369, %v371
        %v382 = vadd.f32 %v370, %v372
        %v383 = vadd.f32 %v373, %v375
        %v384 = vadd.f32 %v374, %v376
        %v385 = vadd.f32 %v377, %v379
        %v386 = vadd.f32 %v378, %v380
        %v387 = vmul.f32 %v381, 0.0625
        %v388 = vmul.f32 %v382, 0.0625
        %v389 = vmul.f32 %v383, 0.0625
        %v390 = vmul.f32 %v384, 0.0625
        %v391 = vmul.f32 %v385, 0.0625
        %v392 = vmul.f32 %v386, 0.0625
        %v393 = vld [vmem:[%s1] ss:$2 sm:$0xf]
        %s394 = scalar_lea.vmem %s1, 1
        %v395 = vld [vmem:[%s394] ss:$2 sm:$0xf]
        %v396 = vld [vmem:[%s253] sm:$0xff]
        %v397 = vld [vmem:[%s253 + $0x8] sm:$0xff]
        %v398 = vld [vmem:[%s253 + $0x10] sm:$0xff]
        %399 = vrot.lane.b32.xlu0 %v387, 1
        %v400 = vpop.permute.xlu0 %399
        %401 = vrot.lane.b32.xlu0 %v389, 1
        %v402 = vpop.permute.xlu0 %401
        %403 = vrot.lane.b32.xlu0 %v391, 1
        %v404 = vpop.permute.xlu0 %403
        %405 = vrot.lane.b32.xlu0 %v388, 1
        %v406 = vpop.permute.xlu0 %405
        %407 = vrot.lane.b32.xlu0 %v390, 1
        %v408 = vpop.permute.xlu0 %407
        %409 = vrot.lane.b32.xlu0 %v392, 1
        %v410 = vpop.permute.xlu0 %409
        %vm411 = vcmp.lt.s32.totalorder %v294, 1
        %v412 = vsel %vm411, %v400, %v406
        %v413 = vsel %vm411, %v402, %v408
        %v414 = vsel %vm411, %v404, %v410
        %v415 = vsel %vm411, %v406, %v400
        %v416 = vsel %vm411, %v408, %v402
        %v417 = vsel %vm411, %v410, %v404
        %v419 = vperm.slane %v393, 0
        %v420 = vperm.slane %v393, 1
        %v421 = vperm.slane %v393, 2
        %v422 = vperm.slane %v393, 3
        %v427 = vmul.f32 %v415, %v419
        %v428 = vmul.f32 %v412, %v420
        %v429 = vmul.f32 %v415, %v421
        %v430 = vmul.f32 %v412, %v422
        %v431 = vmul.f32 %v416, %v419
        %v432 = vmul.f32 %v413, %v420
        %v433 = vmul.f32 %v416, %v421
        %v434 = vmul.f32 %v413, %v422
        %v435 = vmul.f32 %v417, %v419
        %v436 = vmul.f32 %v414, %v420
        %v437 = vmul.f32 %v417, %v421
        %v438 = vmul.f32 %v414, %v422
        %439 = vrot.lane.b32.xlu0 %v387, 127
        %v440 = vpop.permute.xlu0 %439
        %441 = vrot.lane.b32.xlu0 %v389, 127
        %v442 = vpop.permute.xlu0 %441
        %443 = vrot.lane.b32.xlu0 %v391, 127
        %v444 = vpop.permute.xlu0 %443
        %445 = vrot.lane.b32.xlu0 %v388, 127
        %v446 = vpop.permute.xlu0 %445
        %447 = vrot.lane.b32.xlu0 %v390, 127
        %v448 = vpop.permute.xlu0 %447
        %449 = vrot.lane.b32.xlu0 %v392, 127
        %v450 = vpop.permute.xlu0 %449
        %vm451 = vcmp.lt.s32.totalorder %v294, 127
        %v452 = vsel %vm451, %v440, %v446
        %v453 = vsel %vm451, %v442, %v448
        %v454 = vsel %vm451, %v444, %v450
        %v455 = vsel %vm451, %v446, %v440
        %v456 = vsel %vm451, %v448, %v442
        %v457 = vsel %vm451, %v450, %v444
        %v459 = vperm.slane %v395, 0
        %v460 = vperm.slane %v395, 1
        %v461 = vperm.slane %v395, 2
        %v462 = vperm.slane %v395, 3
        %v467 = vmul.f32 %v452, %v459
        %v468 = vmul.f32 %v455, %v460
        %v469 = vmul.f32 %v452, %v461
        %v470 = vmul.f32 %v455, %v462
        %v471 = vmul.f32 %v453, %v459
        %v472 = vmul.f32 %v456, %v460
        %v473 = vmul.f32 %v453, %v461
        %v474 = vmul.f32 %v456, %v462
        %v475 = vmul.f32 %v454, %v459
        %v476 = vmul.f32 %v457, %v460
        %v477 = vmul.f32 %v454, %v461
        %v478 = vmul.f32 %v457, %v462
        %s479 = sld [smem:[#allocation2]]
        %v480 = vstv %s479
        %v481 = vmul.f32 %v480, %v427
        %v482 = vmul.f32 %v480, %v428
        %v483 = vmul.f32 %v480, %v429
        %v484 = vmul.f32 %v480, %v430
        %v485 = vmul.f32 %v480, %v431
        %v486 = vmul.f32 %v480, %v432
        %v487 = vmul.f32 %v480, %v433
        %v488 = vmul.f32 %v480, %v434
        %v489 = vmul.f32 %v480, %v435
        %v490 = vmul.f32 %v480, %v436
        %v491 = vmul.f32 %v480, %v437
        %v492 = vmul.f32 %v480, %v438
        %s493 = sld [smem:[#allocation2 + $0x1]]
        %v494 = vstv %s493
        %v495 = vmul.f32 %v494, %v387
        %v496 = vmul.f32 %v494, %v388
        %v497 = vmul.f32 %v494, %v389
        %v498 = vmul.f32 %v494, %v390
        %v499 = vmul.f32 %v494, %v391
        %v500 = vmul.f32 %v494, %v392
        %v501 = vadd.f32 %v481, %v495
        %v502 = vadd.f32 %v482, %v496
        %v503 = vadd.f32 %v483, %v495
        %v504 = vadd.f32 %v484, %v496
        %v505 = vadd.f32 %v485, %v497
        %v506 = vadd.f32 %v486, %v498
        %v507 = vadd.f32 %v487, %v497
        %v508 = vadd.f32 %v488, %v498
        %v509 = vadd.f32 %v489, %v499
        %v510 = vadd.f32 %v490, %v500
        %v511 = vadd.f32 %v491, %v499
        %v512 = vadd.f32 %v492, %v500
        %s513 = sld [smem:[#allocation2 + $0x2]]
        %v514 = vstv %s513
        %v515 = vmul.f32 %v514, %v467
        %v516 = vmul.f32 %v514, %v468
        %v517 = vmul.f32 %v514, %v469
        %v518 = vmul.f32 %v514, %v470
        %v519 = vmul.f32 %v514, %v471
        %v520 = vmul.f32 %v514, %v472
        %v521 = vmul.f32 %v514, %v473
        %v522 = vmul.f32 %v514, %v474
        %v523 = vmul.f32 %v514, %v475
        %v524 = vmul.f32 %v514, %v476
        %v525 = vmul.f32 %v514, %v477
        %v526 = vmul.f32 %v514, %v478
        %v527 = vadd.f32 %v501, %v515
        %v528 = vadd.f32 %v502, %v516
        %v529 = vadd.f32 %v503, %v517
        %v530 = vadd.f32 %v504, %v518
        %v531 = vadd.f32 %v505, %v519
        %v532 = vadd.f32 %v506, %v520
        %v533 = vadd.f32 %v507, %v521
        %v534 = vadd.f32 %v508, %v522
        %v535 = vadd.f32 %v509, %v523
        %v536 = vadd.f32 %v510, %v524
        %v537 = vadd.f32 %v511, %v525
        %v538 = vadd.f32 %v512, %v526
        %s539 = sld [smem:[#allocation2 + $0x80]]
        %v540 = vstv %s539
        %v541 = vmul.f32 %v540, %v427
        %v542 = vmul.f32 %v540, %v428
        %v543 = vmul.f32 %v540, %v429
        %v544 = vmul.f32 %v540, %v430
        %v545 = vmul.f32 %v540, %v431
        %v546 = vmul.f32 %v540, %v432
        %v547 = vmul.f32 %v540, %v433
        %v548 = vmul.f32 %v540, %v434
        %v549 = vmul.f32 %v540, %v435
        %v550 = vmul.f32 %v540, %v436
        %v551 = vmul.f32 %v540, %v437
        %v552 = vmul.f32 %v540, %v438
        %s553 = sld [smem:[#allocation2 + $0x81]]
        %v554 = vstv %s553
        %v555 = vmul.f32 %v554, %v387
        %v556 = vmul.f32 %v554, %v388
        %v557 = vmul.f32 %v554, %v389
        %v558 = vmul.f32 %v554, %v390
        %v559 = vmul.f32 %v554, %v391
        %v560 = vmul.f32 %v554, %v392
        %v561 = vadd.f32 %v541, %v555
        %v562 = vadd.f32 %v542, %v556
        %v563 = vadd.f32 %v543, %v555
        %v564 = vadd.f32 %v544, %v556
        %v565 = vadd.f32 %v545, %v557
        %v566 = vadd.f32 %v546, %v558
        %v567 = vadd.f32 %v547, %v557
        %v568 = vadd.f32 %v548, %v558
        %v569 = vadd.f32 %v549, %v559
        %v570 = vadd.f32 %v550, %v560
        %v571 = vadd.f32 %v551, %v559
        %v572 = vadd.f32 %v552, %v560
        %s573 = sld [smem:[#allocation2 + $0x82]]
        %v574 = vstv %s573
        %v575 = vmul.f32 %v574, %v467
        %v576 = vmul.f32 %v574, %v468
        %v577 = vmul.f32 %v574, %v469
        %v578 = vmul.f32 %v574, %v470
        %v579 = vmul.f32 %v574, %v471
        %v580 = vmul.f32 %v574, %v472
        %v581 = vmul.f32 %v574, %v473
        %v582 = vmul.f32 %v574, %v474
        %v583 = vmul.f32 %v574, %v475
        %v584 = vmul.f32 %v574, %v476
        %v585 = vmul.f32 %v574, %v477
        %v586 = vmul.f32 %v574, %v478
        %v587 = vadd.f32 %v561, %v575
        %v588 = vadd.f32 %v562, %v576
        %v589 = vadd.f32 %v563, %v577
        %v590 = vadd.f32 %v564, %v578
        %v591 = vadd.f32 %v565, %v579
        %v592 = vadd.f32 %v566, %v580
        %v593 = vadd.f32 %v567, %v581
        %v594 = vadd.f32 %v568, %v582
        %v595 = vadd.f32 %v569, %v583
        %v596 = vadd.f32 %v570, %v584
        %v597 = vadd.f32 %v571, %v585
        %v598 = vadd.f32 %v572, %v586
        %s599 = sld [smem:[#allocation2 + $0x100]]
        %v600 = vstv %s599
        %v601 = vmul.f32 %v600, %v427
        %v602 = vmul.f32 %v600, %v428
        %v603 = vmul.f32 %v600, %v429
        %v604 = vmul.f32 %v600, %v430
        %v605 = vmul.f32 %v600, %v431
        %v606 = vmul.f32 %v600, %v432
        %v607 = vmul.f32 %v600, %v433
        %v608 = vmul.f32 %v600, %v434
        %v609 = vmul.f32 %v600, %v435
        %v610 = vmul.f32 %v600, %v436
        %v611 = vmul.f32 %v600, %v437
        %v612 = vmul.f32 %v600, %v438
        %s613 = sld [smem:[#allocation2 + $0x101]]
        %v614 = vstv %s613
        %v615 = vmul.f32 %v614, %v387
        %v616 = vmul.f32 %v614, %v388
        %v617 = vmul.f32 %v614, %v389
        %v618 = vmul.f32 %v614, %v390
        %v619 = vmul.f32 %v614, %v391
        %v620 = vmul.f32 %v614, %v392
        %v621 = vadd.f32 %v601, %v615
        %v622 = vadd.f32 %v602, %v616
        %v623 = vadd.f32 %v603, %v615
        %v624 = vadd.f32 %v604, %v616
        %v625 = vadd.f32 %v605, %v617
        %v626 = vadd.f32 %v606, %v618
        %v627 = vadd.f32 %v607, %v617
        %v628 = vadd.f32 %v608, %v618
        %v629 = vadd.f32 %v609, %v619
        %v630 = vadd.f32 %v610, %v620
        %v631 = vadd.f32 %v611, %v619
        %v632 = vadd.f32 %v612, %v620
        %s633 = sld [smem:[#allocation2 + $0x102]]
        %v634 = vstv %s633
        %v635 = vmul.f32 %v634, %v467
        %v636 = vmul.f32 %v634, %v468
        %v637 = vmul.f32 %v634, %v469
        %v638 = vmul.f32 %v634, %v470
        %v639 = vmul.f32 %v634, %v471
        %v640 = vmul.f32 %v634, %v472
        %v641 = vmul.f32 %v634, %v473
        %v642 = vmul.f32 %v634, %v474
        %v643 = vmul.f32 %v634, %v475
        %v644 = vmul.f32 %v634, %v476
        %v645 = vmul.f32 %v634, %v477
        %v646 = vmul.f32 %v634, %v478
        %v647 = vadd.f32 %v621, %v635
        %v648 = vadd.f32 %v622, %v636
        %v649 = vadd.f32 %v623, %v637
        %v650 = vadd.f32 %v624, %v638
        %v651 = vadd.f32 %v625, %v639
        %v652 = vadd.f32 %v626, %v640
        %v653 = vadd.f32 %v627, %v641
        %v654 = vadd.f32 %v628, %v642
        %v655 = vadd.f32 %v629, %v643
        %v656 = vadd.f32 %v630, %v644
        %v657 = vadd.f32 %v631, %v645
        %v658 = vadd.f32 %v632, %v646
        %v659 = vrot.slane %v527, 7
        %v660 = vrot.slane %v528, 7
        %v661 = vrot.slane %v529, 7
        %v662 = vrot.slane %v530, 7
        %v663 = vrot.slane %v531, 7
        %v664 = vrot.slane %v532, 7
        %v665 = vrot.slane %v533, 7
        %v666 = vrot.slane %v534, 7
        %v667 = vrot.slane %v535, 7
        %v668 = vrot.slane %v536, 7
        %v669 = vrot.slane %v537, 7
        %v670 = vrot.slane %v538, 7
        %v671 = vlaneseq
        %v672 = vshrl.u32 %v671, 7
        %vm673 = vcmp.lt.s32.totalorder %v672, 1
        %v674 = vsel %vm673, %v663, %v667
        %v675 = vsel %vm673, %v664, %v668
        %v676 = vsel %vm673, %v665, %v669
        %v677 = vsel %vm673, %v666, %v670
        %v678 = vsel %vm673, %v659, %v663
        %v679 = vsel %vm673, %v660, %v664
        %v680 = vsel %vm673, %v661, %v665
        %v681 = vsel %vm673, %v662, %v666
        %v682 = vsel %vm673, %v667, %v659
        %v683 = vsel %vm673, %v668, %v660
        %v684 = vsel %vm673, %v669, %v661
        %v685 = vsel %vm673, %v670, %v662
        %687 = vset.pattern.permute.xlu0 0
        %688 = vperm.xlu0 %687, %v396
        %v689 = vpop.permute.xlu0 %688
        %692 = vset.pattern.permute.xlu0 0
        %693 = vperm.xlu0 %692, %v397
        %v694 = vpop.permute.xlu0 %693
        %697 = vset.pattern.permute.xlu0 0
        %698 = vperm.xlu0 %697, %v398
        %v699 = vpop.permute.xlu0 %698
        %v701 = vmul.f32 %v682, %v689
        %v702 = vmul.f32 %v683, %v689
        %v703 = vmul.f32 %v684, %v689
        %v704 = vmul.f32 %v685, %v689
        %v705 = vmul.f32 %v678, %v694
        %v706 = vmul.f32 %v679, %v694
        %v707 = vmul.f32 %v680, %v694
        %v708 = vmul.f32 %v681, %v694
        %v709 = vmul.f32 %v674, %v699
        %v710 = vmul.f32 %v675, %v699
        %v711 = vmul.f32 %v676, %v699
        %v712 = vmul.f32 %v677, %v699
        %v713 = vadd.f32 %v587, %v701
        %v714 = vadd.f32 %v588, %v702
        %v715 = vadd.f32 %v589, %v703
        %v716 = vadd.f32 %v590, %v704
        %v717 = vadd.f32 %v591, %v705
        %v718 = vadd.f32 %v592, %v706
        %v719 = vadd.f32 %v593, %v707
        %v720 = vadd.f32 %v594, %v708
        %v721 = vadd.f32 %v595, %v709
        %v722 = vadd.f32 %v596, %v710
        %v723 = vadd.f32 %v597, %v711
        %v724 = vadd.f32 %v598, %v712
        %v725 = vrot.slane %v647, 1
        %v726 = vrot.slane %v648, 1
        %v727 = vrot.slane %v649, 1
        %v728 = vrot.slane %v650, 1
        %v729 = vrot.slane %v651, 1
        %v730 = vrot.slane %v652, 1
        %v731 = vrot.slane %v653, 1
        %v732 = vrot.slane %v654, 1
        %v733 = vrot.slane %v655, 1
        %v734 = vrot.slane %v656, 1
        %v735 = vrot.slane %v657, 1
        %v736 = vrot.slane %v658, 1
        %vm737 = vcmp.lt.s32.totalorder %v672, 7
        %v738 = vsel %vm737, %v729, %v733
        %v739 = vsel %vm737, %v730, %v734
        %v740 = vsel %vm737, %v731, %v735
        %v741 = vsel %vm737, %v732, %v736
        %v742 = vsel %vm737, %v725, %v729
        %v743 = vsel %vm737, %v726, %v730
        %v744 = vsel %vm737, %v727, %v731
        %v745 = vsel %vm737, %v728, %v732
        %v746 = vsel %vm737, %v733, %v725
        %v747 = vsel %vm737, %v734, %v726
        %v748 = vsel %vm737, %v735, %v727
        %v749 = vsel %vm737, %v736, %v728
        %750 = vset.pattern.permute.xlu0 1
        %751 = vperm.xlu0 %750, %v396
        %v752 = vpop.permute.xlu0 %751
        %754 = vset.pattern.permute.xlu0 1
        %755 = vperm.xlu0 %754, %v397
        %v756 = vpop.permute.xlu0 %755
        %758 = vset.pattern.permute.xlu0 1
        %759 = vperm.xlu0 %758, %v398
        %v760 = vpop.permute.xlu0 %759
        %v762 = vmul.f32 %v742, %v752
        %v763 = vmul.f32 %v743, %v752
        %v764 = vmul.f32 %v744, %v752
        %v765 = vmul.f32 %v745, %v752
        %v766 = vmul.f32 %v738, %v756
        %v767 = vmul.f32 %v739, %v756
        %v768 = vmul.f32 %v740, %v756
        %v769 = vmul.f32 %v741, %v756
        %v770 = vmul.f32 %v746, %v760
        %v771 = vmul.f32 %v747, %v760
        %v772 = vmul.f32 %v748, %v760
        %v773 = vmul.f32 %v749, %v760
        %v774 = vadd.f32 %v713, %v762
        %v775 = vadd.f32 %v714, %v763
        %v776 = vadd.f32 %v715, %v764
        %v777 = vadd.f32 %v716, %v765
        %v778 = vadd.f32 %v717, %v766
        %v779 = vadd.f32 %v718, %v767
        %v780 = vadd.f32 %v719, %v768
        %v781 = vadd.f32 %v720, %v769
        %v782 = vadd.f32 %v721, %v770
        %v783 = vadd.f32 %v722, %v771
        %v784 = vadd.f32 %v723, %v772
        %v785 = vadd.f32 %v724, %v773
        %v786 = vxor.u32 %v774, 2147483648
        %v787 = vxor.u32 %v775, 2147483648
        %v788 = vxor.u32 %v776, 2147483648
        %v789 = vxor.u32 %v777, 2147483648
        %v790 = vxor.u32 %v778, 2147483648
        %v791 = vxor.u32 %v779, 2147483648
        %v792 = vxor.u32 %v780, 2147483648
        %v793 = vxor.u32 %v781, 2147483648
        %v794 = vxor.u32 %v782, 2147483648
        %v795 = vxor.u32 %v783, 2147483648
        %v796 = vxor.u32 %v784, 2147483648
        %v797 = vxor.u32 %v785, 2147483648
        %v798 = vmul.f32 %v786, 1.442695
        %v799 = vpow.pop %v798
        %v800 = vmul.f32 %v787, 1.442695
        %v801 = vpow.pop %v800
        %v802 = vmul.f32 %v788, 1.442695
        %v803 = vpow.pop %v802
        %v804 = vmul.f32 %v789, 1.442695
        %v805 = vpow.pop %v804
        %v806 = vmul.f32 %v790, 1.442695
        %v807 = vpow.pop %v806
        %v808 = vmul.f32 %v791, 1.442695
        %v809 = vpow.pop %v808
        %v810 = vmul.f32 %v792, 1.442695
        %v811 = vpow.pop %v810
        %v812 = vmul.f32 %v793, 1.442695
        %v813 = vpow.pop %v812
        %v814 = vmul.f32 %v794, 1.442695
        %v815 = vpow.pop %v814
        %v816 = vmul.f32 %v795, 1.442695
        %v817 = vpow.pop %v816
        %v818 = vmul.f32 %v796, 1.442695
        %v819 = vpow.pop %v818
        %v820 = vmul.f32 %v797, 1.442695
        %v821 = vpow.pop %v820
        %v822 = vadd.f32 %v799, 1.0
        %v823 = vadd.f32 %v801, 1.0
        %v824 = vadd.f32 %v803, 1.0
        %v825 = vadd.f32 %v805, 1.0
        %v826 = vadd.f32 %v807, 1.0
        %v827 = vadd.f32 %v809, 1.0
        %v828 = vadd.f32 %v811, 1.0
        %v829 = vadd.f32 %v813, 1.0
        %v830 = vadd.f32 %v815, 1.0
        %v831 = vadd.f32 %v817, 1.0
        %v832 = vadd.f32 %v819, 1.0
        %v833 = vadd.f32 %v821, 1.0
        %v834 = vrcp.pop %v822
        %v835 = vmul.f32 %v822, %v834
        %v836 = vsub.f32 1.0, %v835
        %v837 = vmul.f32 %v834, %v836
        %v838 = vadd.f32 %v834, %v837
        %vm839 = vweird.f32 %v822
        %vm840 = vweird.f32 %v834
        %vm841 = vmor %vm839, %vm840
        %v842 = vsel %vm841, %v834, %v838
        %v843 = vand.u32 2147483647, %v822
        %vm844 = vcmp.eq.f32.partialorder %v843, 8.507059e+37
        %v845 = vand.u32 %v822, 2147483648
        %v846 = vor.u32 1.1754944e-38, %v845
        %v847 = vsel %vm844, %v846, %v842
        %v848 = vmul.f32 1.0, %v847
        %v849 = vrcp.pop %v823
        %v850 = vmul.f32 %v823, %v849
        %v851 = vsub.f32 1.0, %v850
        %v852 = vmul.f32 %v849, %v851
        %v853 = vadd.f32 %v849, %v852
        %vm854 = vweird.f32 %v823
        %vm855 = vweird.f32 %v849
        %vm856 = vmor %vm854, %vm855
        %v857 = vsel %vm856, %v849, %v853
        %v858 = vand.u32 2147483647, %v823
        %vm859 = vcmp.eq.f32.partialorder %v858, 8.507059e+37
        %v860 = vand.u32 %v823, 2147483648
        %v861 = vor.u32 1.1754944e-38, %v860
        %v862 = vsel %vm859, %v861, %v857
        %v863 = vmul.f32 1.0, %v862
        %v864 = vrcp.pop %v824
        %v865 = vmul.f32 %v824, %v864
        %v866 = vsub.f32 1.0, %v865
        %v867 = vmul.f32 %v864, %v866
        %v868 = vadd.f32 %v864, %v867
        %vm869 = vweird.f32 %v824
        %vm870 = vweird.f32 %v864
        %vm871 = vmor %vm869, %vm870
        %v872 = vsel %vm871, %v864, %v868
        %v873 = vand.u32 2147483647, %v824
        %vm874 = vcmp.eq.f32.partialorder %v873, 8.507059e+37
        %v875 = vand.u32 %v824, 2147483648
        %v876 = vor.u32 1.1754944e-38, %v875
        %v877 = vsel %vm874, %v876, %v872
        %v878 = vmul.f32 1.0, %v877
        %v879 = vrcp.pop %v825
        %v880 = vmul.f32 %v825, %v879
        %v881 = vsub.f32 1.0, %v880
        %v882 = vmul.f32 %v879, %v881
        %v883 = vadd.f32 %v879, %v882
        %vm884 = vweird.f32 %v825
        %vm885 = vweird.f32 %v879
        %vm886 = vmor %vm884, %vm885
        %v887 = vsel %vm886, %v879, %v883
        %v888 = vand.u32 2147483647, %v825
        %vm889 = vcmp.eq.f32.partialorder %v888, 8.507059e+37
        %v890 = vand.u32 %v825, 2147483648
        %v891 = vor.u32 1.1754944e-38, %v890
        %v892 = vsel %vm889, %v891, %v887
        %v893 = vmul.f32 1.0, %v892
        %v894 = vrcp.pop %v826
        %v895 = vmul.f32 %v826, %v894
        %v896 = vsub.f32 1.0, %v895
        %v897 = vmul.f32 %v894, %v896
        %v898 = vadd.f32 %v894, %v897
        %vm899 = vweird.f32 %v826
        %vm900 = vweird.f32 %v894
        %vm901 = vmor %vm899, %vm900
        %v902 = vsel %vm901, %v894, %v898
        %v903 = vand.u32 2147483647, %v826
        %vm904 = vcmp.eq.f32.partialorder %v903, 8.507059e+37
        %v905 = vand.u32 %v826, 2147483648
        %v906 = vor.u32 1.1754944e-38, %v905
        %v907 = vsel %vm904, %v906, %v902
        %v908 = vmul.f32 1.0, %v907
        %v909 = vrcp.pop %v827
        %v910 = vmul.f32 %v827, %v909
        %v911 = vsub.f32 1.0, %v910
        %v912 = vmul.f32 %v909, %v911
        %v913 = vadd.f32 %v909, %v912
        %vm914 = vweird.f32 %v827
        %vm915 = vweird.f32 %v909
        %vm916 = vmor %vm914, %vm915
        %v917 = vsel %vm916, %v909, %v913
        %v918 = vand.u32 2147483647, %v827
        %vm919 = vcmp.eq.f32.partialorder %v918, 8.507059e+37
        %v920 = vand.u32 %v827, 2147483648
        %v921 = vor.u32 1.1754944e-38, %v920
        %v922 = vsel %vm919, %v921, %v917
        %v923 = vmul.f32 1.0, %v922
        %v924 = vrcp.pop %v828
        %v925 = vmul.f32 %v828, %v924
        %v926 = vsub.f32 1.0, %v925
        %v927 = vmul.f32 %v924, %v926
        %v928 = vadd.f32 %v924, %v927
        %vm929 = vweird.f32 %v828
        %vm930 = vweird.f32 %v924
        %vm931 = vmor %vm929, %vm930
        %v932 = vsel %vm931, %v924, %v928
        %v933 = vand.u32 2147483647, %v828
        %vm934 = vcmp.eq.f32.partialorder %v933, 8.507059e+37
        %v935 = vand.u32 %v828, 2147483648
        %v936 = vor.u32 1.1754944e-38, %v935
        %v937 = vsel %vm934, %v936, %v932
        %v938 = vmul.f32 1.0, %v937
        %v939 = vrcp.pop %v829
        %v940 = vmul.f32 %v829, %v939
        %v941 = vsub.f32 1.0, %v940
        %v942 = vmul.f32 %v939, %v941
        %v943 = vadd.f32 %v939, %v942
        %vm944 = vweird.f32 %v829
        %vm945 = vweird.f32 %v939
        %vm946 = vmor %vm944, %vm945
        %v947 = vsel %vm946, %v939, %v943
        %v948 = vand.u32 2147483647, %v829
        %vm949 = vcmp.eq.f32.partialorder %v948, 8.507059e+37
        %v950 = vand.u32 %v829, 2147483648
        %v951 = vor.u32 1.1754944e-38, %v950
        %v952 = vsel %vm949, %v951, %v947
        %v953 = vmul.f32 1.0, %v952
        %v954 = vrcp.pop %v830
        %v955 = vmul.f32 %v830, %v954
        %v956 = vsub.f32 1.0, %v955
        %v957 = vmul.f32 %v954, %v956
        %v958 = vadd.f32 %v954, %v957
        %vm959 = vweird.f32 %v830
        %vm960 = vweird.f32 %v954
        %vm961 = vmor %vm959, %vm960
        %v962 = vsel %vm961, %v954, %v958
        %v963 = vand.u32 2147483647, %v830
        %vm964 = vcmp.eq.f32.partialorder %v963, 8.507059e+37
        %v965 = vand.u32 %v830, 2147483648
        %v966 = vor.u32 1.1754944e-38, %v965
        %v967 = vsel %vm964, %v966, %v962
        %v968 = vmul.f32 1.0, %v967
        %v969 = vrcp.pop %v831
        %v970 = vmul.f32 %v831, %v969
        %v971 = vsub.f32 1.0, %v970
        %v972 = vmul.f32 %v969, %v971
        %v973 = vadd.f32 %v969, %v972
        %vm974 = vweird.f32 %v831
        %vm975 = vweird.f32 %v969
        %vm976 = vmor %vm974, %vm975
        %v977 = vsel %vm976, %v969, %v973
        %v978 = vand.u32 2147483647, %v831
        %vm979 = vcmp.eq.f32.partialorder %v978, 8.507059e+37
        %v980 = vand.u32 %v831, 2147483648
        %v981 = vor.u32 1.1754944e-38, %v980
        %v982 = vsel %vm979, %v981, %v977
        %v983 = vmul.f32 1.0, %v982
        %v984 = vrcp.pop %v832
        %v985 = vmul.f32 %v832, %v984
        %v986 = vsub.f32 1.0, %v985
        %v987 = vmul.f32 %v984, %v986
        %v988 = vadd.f32 %v984, %v987
        %vm989 = vweird.f32 %v832
        %vm990 = vweird.f32 %v984
        %vm991 = vmor %vm989, %vm990
        %v992 = vsel %vm991, %v984, %v988
        %v993 = vand.u32 2147483647, %v832
        %vm994 = vcmp.eq.f32.partialorder %v993, 8.507059e+37
        %v995 = vand.u32 %v832, 2147483648
        %v996 = vor.u32 1.1754944e-38, %v995
        %v997 = vsel %vm994, %v996, %v992
        %v998 = vmul.f32 1.0, %v997
        %v999 = vrcp.pop %v833
        %v1000 = vmul.f32 %v833, %v999
        %v1001 = vsub.f32 1.0, %v1000
        %v1002 = vmul.f32 %v999, %v1001
        %v1003 = vadd.f32 %v999, %v1002
        %vm1004 = vweird.f32 %v833
        %vm1005 = vweird.f32 %v999
        %vm1006 = vmor %vm1004, %vm1005
        %v1007 = vsel %vm1006, %v999, %v1003
        %v1008 = vand.u32 2147483647, %v833
        %vm1009 = vcmp.eq.f32.partialorder %v1008, 8.507059e+37
        %v1010 = vand.u32 %v833, 2147483648
        %v1011 = vor.u32 1.1754944e-38, %v1010
        %v1012 = vsel %vm1009, %v1011, %v1007
        %v1013 = vmul.f32 1.0, %v1012
        %v1014 = vadd.f32 %v848, 1.0
        %v1015 = vadd.f32 %v863, 1.0
        %v1016 = vadd.f32 %v878, 1.0
        %v1017 = vadd.f32 %v893, 1.0
        %v1018 = vadd.f32 %v908, 1.0
        %v1019 = vadd.f32 %v923, 1.0
        %v1020 = vadd.f32 %v938, 1.0
        %v1021 = vadd.f32 %v953, 1.0
        %v1022 = vadd.f32 %v968, 1.0
        %v1023 = vadd.f32 %v983, 1.0
        %v1024 = vadd.f32 %v998, 1.0
        %v1025 = vadd.f32 %v1013, 1.0
        %v1026 = vmul.f32 %v257, %v1014
        %v1027 = vmul.f32 %v258, %v1015
        %v1028 = vmul.f32 %v259, %v1016
        %v1029 = vmul.f32 %v260, %v1017
        %v1030 = vmul.f32 %v261, %v1018
        %v1031 = vmul.f32 %v262, %v1019
        %v1032 = vmul.f32 %v263, %v1020
        %v1033 = vmul.f32 %v264, %v1021
        %v1034 = vmul.f32 %v265, %v1022
        %v1035 = vmul.f32 %v266, %v1023
        %v1036 = vmul.f32 %v267, %v1024
        %v1037 = vmul.f32 %v268, %v1025
        %1038 = vst [vmem:[%s248] sm:$0xff] %v1026
        %1039 = vst [vmem:[%s248 + $0x8] sm:$0xff] %v1027
        %1040 = vst [vmem:[%s248 + $0x10] sm:$0xff] %v1028
        %1041 = vst [vmem:[%s248 + $0x18] sm:$0xff] %v1029
        %1042 = vst [vmem:[%s248 + $0x20] sm:$0xff] %v1030
        %1043 = vst [vmem:[%s248 + $0x28] sm:$0xff] %v1031
        %1044 = vst [vmem:[%s248 + $0x30] sm:$0xff] %v1032
        %1045 = vst [vmem:[%s248 + $0x38] sm:$0xff] %v1033
        %1046 = vst [vmem:[%s248 + $0x40] sm:$0xff] %v1034
        %1047 = vst [vmem:[%s248 + $0x48] sm:$0xff] %v1035
        %1048 = vst [vmem:[%s248 + $0x50] sm:$0xff] %v1036
        %1049 = vst [vmem:[%s248 + $0x58] sm:$0xff] %v1037
        %s1050 = sand.u32 %s124, 1
        %s1051 = scalar_lea.sflag [#allocation4], %s1050
        %s1052 = sand.u32 %s124, 1
        %s1053 = smul.addr %s1052, 96
        %s1054 = scalar_lea.vmem [#allocation7], %s1053
        // Predicated region
        $region45: #{tpu_custom_call.1} parent=35 // pred_check
          %p1055 = pneg %p134
        $region46: #{tpu_custom_call.1} parent=35 // pred_check_branch
          %1057 = sbr.rel (%p1055) target = $region48
        $region47: #{tpu_custom_call.1} parent=35 // pred_region
          %s1058 = smul.u32 3, %s22
          %1060 = vsyncadd %s1051, 0
          %s1061 = smul.addr %s1058, 4
          %s1062 = smul.addr %s1061, 8
          %s1063 = scalar_lea.hbm %s4, %s1062
          %s1064 = sshll.u32 %s1054, 4
          %s1065 = int_to_ptr.vmem [resolvable:$true] %s1064
          %s1066 = sshll.u32 %s1063, 4
          %s1067 = int_to_ptr.hbm [resolvable:$true] %s1066
          %1072 = dma.vmem_to_hbm [thread:$0]  %s1065, 1536, %s1067, %s1051, 512, 512, 32
        $region48: #{tpu_custom_call.1} parent=35 // pred_fallthru
          _
      $region36: #{tpu_custom_call.1} parent=5 // pred_fallthru
        _
      %p1073 = scmp.le.s32.totalorder 2, %s17
      // Predicated region
      $region49: #{tpu_custom_call.1} parent=5 // pred_check
        %p1074 = pneg %p1073
      $region50: #{tpu_custom_call.1} parent=5 // pred_check_branch
        %1076 = sbr.rel (%p1074) target = $region52
      $region51: #{tpu_custom_call.1} parent=5 // pred_region
        %s1077 = ssub.s32 %s17, 2
        // Predicated region
        $region53: #{tpu_custom_call.1} parent=51 // pred_check
          %p1078 = pneg %p140
        $region54: #{tpu_custom_call.1} parent=51 // pred_check_branch
          %1080 = sbr.rel (%p1078) target = $region56
        $region55: #{tpu_custom_call.1} parent=51 // pred_region
          %s1081 = sand.u32 %s125, 1
          %s1082 = scalar_lea.sflag [#allocation4], %s1081
          %s1083 = sand.u32 %s125, 1
          %s1084 = smul.addr %s1083, 96
          %s1085 = scalar_lea.vmem [#allocation7], %s1084
          %1087 = dma.done %s1082, 1536
        $region56: #{tpu_custom_call.1} parent=51 // pred_fallthru
          _
      $region52: #{tpu_custom_call.1} parent=5 // pred_fallthru
        _
    $region6: #{tpu_custom_call.1} parent=1 // loop_footer
      %s21 = sadd.s32 1, %s17
    $region7: #{tpu_custom_call.1} parent=1 // loop_footer_branch
      %16 = sbr.rel target = $region3
    $region8: #{tpu_custom_call.1} parent=1 // loop_exit
      _
    %1088 = vsyncpa [#allocation3], 1
    %s1089 = scalar_lea.sflag [#allocation3], 1
    %1090 = vsyncpa %s1089, 1
    %1091 = vsyncpa [#allocation4], 1
    %s1092 = scalar_lea.sflag [#allocation4], 1
    %1093 = vsyncpa %s1092, 1
    %1094 = vsyncpa [#allocation5], 1
    %s1095 = scalar_lea.sflag [#allocation5], 1
    %1096 = vsyncpa %s1095, 1

</llo_original>
